<compile_context>
chip_gen: v7x
topology: tpu7x:2x2x1
jax: 0.10.0
libtpu: 0.0.40
codegen_flags: <defaults>
</compile_context>

<pallas_src>
import functools
from typing import NamedTuple, Optional, Tuple, Union

import jax
import jax.numpy as jnp
from jax.experimental import pallas as pl
from jax.experimental.pallas import tpu as pltpu


class TNormState(NamedTuple):
    running_mean: jnp.ndarray          # (domain_number, num_features)
    running_var: jnp.ndarray           # (domain_number, num_features)
    num_batches_tracked: jnp.ndarray   # (domain_number,) int32


def init_tnorm_state(num_features: int, domain_number: int) -> TNormState:
    return TNormState(
        running_mean=jnp.zeros((domain_number, num_features), jnp.float32),
        running_var=jnp.ones((domain_number, num_features), jnp.float32),
        num_batches_tracked=jnp.zeros((domain_number,), jnp.int32),
    )


# Per-block byte budget and scoped-VMEM limit.  Convert double-buffers one
# input + one output block (~4x block bytes = 16 MiB) -> safely under the
# 48 MiB limit on every generation, including v7x's 64 MiB physical VMEM.
_TILE_TARGET_BYTES = 4 * 1024 * 1024
_VMEM_LIMIT_BYTES = 48 * 1024 * 1024


def _choose_tiles(n_rows: int, L: int, itemsize: int,
                  target_bytes: Optional[int] = None) -> Tuple[int, int]:
    """Pick (row_tile, lane_tile) for a (n_rows, L) array.

    row_tile is a multiple of 8 (or the full row dim); lane_tile is a multiple
    of 128 (or the full L).  The block is grown toward `target_bytes`,
    preferring full rows (contiguous DMA) and stacking rows, otherwise taking
    the minimum row count and as many 128-lane chunks as fit the budget.
    """
    target = int(target_bytes) if target_bytes else _TILE_TARGET_BYTES
    min_rows = n_rows if n_rows < 8 else 8
    row_bytes = L * itemsize
    if row_bytes * min_rows <= target:
        # full rows fit: stack rows up to the byte budget
        tl = L
        max_rows = max(min_rows, target // row_bytes)
        if n_rows <= max_rows:
            r = n_rows                       # full dim is always legal
        else:
            r = max(8, (max_rows // 8) * 8)  # multiple of 8 sublanes
    else:
        # rows are long: minimum row count, tile the lane axis
        r = min_rows
        max_lanes = max(128, target // (r * itemsize))
        tl = L if L <= max_lanes else max(128, (max_lanes // 128) * 128)
    return r, tl


# ---------------------------------------------------------------------------
# Kernel 1: per-row spatial mean + unbiased variance, tiled over L.
#   Rows are the merged (N*C) axis.  Centered single-pass accumulation:
#   c = mean of first tile, then accumulate sum(x-c) and sum((x-c)^2);
#   combine at the last tile.
# ---------------------------------------------------------------------------
def _stats_kernel(x_ref, mean_ref, var_ref, c_ref, s1_ref, s2_ref,
                  *, L, TL, needs_mask):
    l = pl.program_id(1)
    n_l = pl.num_programs(1)
    x = x_ref[...].astype(jnp.float32)                         # (R, TL)

    @pl.when(l == 0)
    def _init():
        # first lane tile is always full (TL == L when there is only one tile,
        # and needs_mask implies n_l >= 2 with full leading tiles).
        c_ref[...] = jnp.sum(x, axis=-1, keepdims=True) * (1.0 / TL)
        s1_ref[...] = jnp.zeros_like(s1_ref)
        s2_ref[...] = jnp.zeros_like(s2_ref)

    d = x - c_ref[...]                                         # (R, TL)

    def _accumulate(dv):
        s1_ref[...] += jnp.sum(dv, axis=-1, keepdims=True)
        s2_ref[...] += jnp.sum(dv * dv, axis=-1, keepdims=True)

    if needs_mask:
        # Pay the iota/compare/where cost only on the (single) partial tile.
        is_last = l == n_l - 1

        @pl.when(l != n_l - 1)
        def _acc_full():
            _accumulate(d)

        @pl.when(is_last)
        def _acc_masked():
            rem = L % TL                                       # static, > 0
            lane = jax.lax.broadcasted_iota(jnp.int32, d.shape, 1)
            _accumulate(jnp.where(lane < rem, d, 0.0))
    else:
        _accumulate(d)

    @pl.when(l == n_l - 1)
    def _finalize():
        s1 = s1_ref[...]
        s2 = s2_ref[...]
        inv_l = 1.0 / L
        # torch.var defaults to the unbiased estimator (divide by L-1);
        # L == 1 yields NaN, matching PyTorch semantics.
        inv_lm1 = 1.0 / (L - 1) if L > 1 else float("nan")
        mean_ref[...] = c_ref[...] + s1 * inv_l
        var_ref[...] = (s2 - s1 * s1 * inv_l) * inv_lm1


def instance_stats(x2: jnp.ndarray, tile_target_bytes: Optional[int] = None):
    """x2: (N*C, L) -> (mean, var), each (N*C, 1) float32."""
    n_rows, L = x2.shape
    R, TL = _choose_tiles(n_rows, L, jnp.dtype(x2.dtype).itemsize, tile_target_bytes)
    n_r = pl.cdiv(n_rows, R)
    n_l = pl.cdiv(L, TL)
    needs_mask = (L % TL) != 0

    kernel = functools.partial(_stats_kernel, L=L, TL=TL, needs_mask=needs_mask)
    out_shape = (
        jax.ShapeDtypeStruct((n_rows, 1), jnp.float32),
        jax.ShapeDtypeStruct((n_rows, 1), jnp.float32),
    )
    # Output blocks are resident across the (inner, "arbitrary") L axis, so
    # they are written back to HBM only once per row block.
    return pl.pallas_call(
        kernel,
        out_shape=out_shape,
        grid_spec=pltpu.PrefetchScalarGridSpec(
            num_scalar_prefetch=0,
            grid=(n_r, n_l),
            in_specs=[pl.BlockSpec((R, TL), lambda r, l: (r, l))],
            out_specs=(
                pl.BlockSpec((R, 1), lambda r, l: (r, 0)),
                pl.BlockSpec((R, 1), lambda r, l: (r, 0)),
            ),
            scratch_shapes=[pltpu.VMEM((R, 1), jnp.float32)] * 3,
        ),
        compiler_params=pltpu.CompilerParams(
            dimension_semantics=("parallel", "arbitrary"),
            vmem_limit_bytes=_VMEM_LIMIT_BYTES,
        ),
    )(x2)


# ---------------------------------------------------------------------------
# Kernel 2: y = x * scale + shift  (scale/shift precomputed per row).
# ---------------------------------------------------------------------------
def _convert_kernel(x_ref, scale_ref, shift_ref, o_ref):
    x = x_ref[...].astype(jnp.float32)                         # (R, TL)
    o_ref[...] = (x * scale_ref[...] + shift_ref[...]).astype(o_ref.dtype)


def convert_normalize(x2, scale, shift, tile_target_bytes: Optional[int] = None):
    """x2: (N*C, L); scale/shift: (N*C, 1) f32. Returns (N*C, L) in x2.dtype."""
    n_rows, L = x2.shape
    R, TL = _choose_tiles(n_rows, L, jnp.dtype(x2.dtype).itemsize, tile_target_bytes)
    n_r = pl.cdiv(n_rows, R)
    n_l = pl.cdiv(L, TL)
    stat_spec = pl.BlockSpec((R, 1), lambda r, l: (r, 0))
    return pl.pallas_call(
        _convert_kernel,
        out_shape=jax.ShapeDtypeStruct((n_rows, L), x2.dtype),
        grid_spec=pltpu.PrefetchScalarGridSpec(
            num_scalar_prefetch=0,
            grid=(n_r, n_l),
            in_specs=[
                pl.BlockSpec((R, TL), lambda r, l: (r, l)),
                stat_spec,
                stat_spec,
            ],
            out_specs=pl.BlockSpec((R, TL), lambda r, l: (r, l)),
        ),
        compiler_params=pltpu.CompilerParams(
            dimension_semantics=("parallel", "parallel"),
            vmem_limit_bytes=_VMEM_LIMIT_BYTES,
        ),
    )(x2, scale, shift)


# ---------------------------------------------------------------------------
# Functional TNorm forward (mirrors the PyTorch branch structure).
# ---------------------------------------------------------------------------
def tnorm_forward(
    x: jnp.ndarray,                                   # (N, C, H, W)
    state: TNormState,
    *,
    training: bool,
    domain_index: Optional[Union[int, jnp.ndarray, Tuple]] = None,
    convert: bool = False,
    selected_domain: Optional[jnp.ndarray] = None,    # (N,) int
    eps: float = 1e-5,
    momentum: float = 0.9,
    using_moving_average: bool = True,
    tile_target_bytes: Optional[int] = None,
):
    if x.ndim != 4:
        raise ValueError(f"expected 4D input (got {x.ndim}D input)")
    N, C, H, W = x.shape
    L = H * W
    x2 = x.reshape(N * C, L)

    new_state = state
    out2 = x2

    def _batch_stats():
        # Only called on branches that actually need instance statistics.
        mean_r, var_r = instance_stats(x2, tile_target_bytes)     # (N*C, 1)
        mean_in = mean_r.reshape(N, C, 1)
        var_in = var_r.reshape(N, C, 1)
        temp = var_in + mean_in ** 2
        mean_bn = jnp.mean(mean_in, axis=0, keepdims=True)         # (1, C, 1)
        var_bn = jnp.mean(temp, axis=0, keepdims=True) - mean_bn ** 2
        return mean_bn, var_bn

    def _scale_shift(mean_bn, var_bn, conv_mean, conv_var):
        scale = jnp.sqrt((conv_var + eps) / (var_bn + eps))
        shift = conv_mean - mean_bn * scale
        scale = jnp.broadcast_to(scale, (N, C, 1)).reshape(N * C, 1).astype(jnp.float32)
        shift = jnp.broadcast_to(shift, (N, C, 1)).reshape(N * C, 1).astype(jnp.float32)
        return scale, shift

    if training:
        if convert:
            assert selected_domain is not None
            if domain_index is not None and not isinstance(domain_index, int):
                # per-sample running statistics as the source (no instance stats)
                mean_bn = state.running_mean[domain_index][:, :, None]   # (N, C, 1)
                var_bn = state.running_var[domain_index][:, :, None]
            else:
                # batch statistics as the source (detach() is a no-op forward)
                mean_bn, var_bn = _batch_stats()                         # (1, C, 1)
            conv_mean = state.running_mean[selected_domain][:, :, None]  # (N, C, 1)
            conv_var = state.running_var[selected_domain][:, :, None]

            scale, shift = _scale_shift(mean_bn, var_bn, conv_mean, conv_var)
            out2 = convert_normalize(x2, scale, shift, tile_target_bytes)

            if domain_index is not None and isinstance(domain_index, int):
                new_state = _update_buffers(
                    state, domain_index, mean_bn, var_bn,
                    momentum, using_moving_average)
        elif domain_index is not None:
            # output untouched; only running buffers are updated
            if isinstance(domain_index, int):
                mean_bn, var_bn = _batch_stats()
                new_state = _update_buffers(
                    state, domain_index, mean_bn, var_bn,
                    momentum, using_moving_average)
            # TODO(synk): tensor-valued domain_index in this branch - in the
            # PyTorch source the advanced-index .mul_() operates on a copy and
            # is a silent no-op, so we skip it (and skip the stats pass) too.
    else:
        if convert:
            assert domain_index is not None
            src_idx, dst_idx = domain_index                              # ((N,), int)
            mean_bn = state.running_mean[src_idx][:, :, None]            # (N, C, 1)
            var_bn = state.running_var[src_idx][:, :, None]
            conv_mean = state.running_mean[dst_idx][None, :, None]       # (1, C, 1)
            conv_var = state.running_var[dst_idx][None, :, None]
            scale, shift = _scale_shift(mean_bn, var_bn, conv_mean, conv_var)
            out2 = convert_normalize(x2, scale, shift, tile_target_bytes)
        # else: identity

    return out2.reshape(N, C, H, W), new_state


def _update_buffers(state, domain_index, mean_bn, var_bn,
                    momentum, using_moving_average):
    rm, rv, nbt = state.running_mean, state.running_var, state.num_batches_tracked
    m = jnp.reshape(mean_bn, (-1,))
    v = jnp.reshape(var_bn, (-1,))
    if using_moving_average:
        rm = rm.at[domain_index].set(momentum * rm[domain_index] + (1.0 - momentum) * m)
        rv = rv.at[domain_index].set(momentum * rv[domain_index] + (1.0 - momentum) * v)
    else:
        nbt = nbt.at[domain_index].add(1)
        f = 1.0 - 1.0 / nbt[domain_index].astype(jnp.float32)
        rm = rm.at[domain_index].set(f * rm[domain_index] + (1.0 - f) * m)
        rv = rv.at[domain_index].set(f * rv[domain_index] + (1.0 - f) * v)
    return TNormState(rm, rv, nbt)


# ---------------------------------------------------------------------------
# Pure-JAX references.
# ---------------------------------------------------------------------------
def _ref_train_convert(x, state, selected_domain, eps):
    N, C, H, W = x.shape
    xf = x.reshape(N, C, -1).astype(jnp.float32)
    mean_in = xf.mean(-1, keepdims=True)
    var_in = xf.var(-1, keepdims=True, ddof=1)
    temp = var_in + mean_in ** 2
    mean_bn = mean_in.mean(0, keepdims=True)
    var_bn = temp.mean(0, keepdims=True) - mean_bn ** 2
    sig = jnp.sqrt(var_bn + eps)
    x_after_in = (xf - mean_bn) / sig
    cm = state.running_mean[selected_domain][:, :, None]
    cv = state.running_var[selected_domain][:, :, None]
    y = x_after_in * jnp.sqrt(cv + eps) + cm
    return y.reshape(N, C, H, W), mean_bn, var_bn


def _ref_eval_convert(x, state, src_idx, dst_idx, eps):
    N, C, H, W = x.shape
    xf = x.reshape(N, C, -1).astype(jnp.float32)
    mb = state.running_mean[src_idx][:, :, None]
    vb = state.running_var[src_idx][:, :, None]
    xa = (xf - mb) / jnp.sqrt(vb + eps)
    cm = state.running_mean[dst_idx][None, :, None]
    cv = state.running_var[dst_idx][None, :, None]
    return (xa * jnp.sqrt(cv + eps) + cm).reshape(N, C, H, W)


if __name__ == "__main__":
    key = jax.random.PRNGKey(0)
    k1, k2, k3 = jax.random.split(key, 3)

    D = 3                     # domain_number
    eps, momentum = 1e-5, 0.9
    N, C, H, W = 2, 4, 16, 16

    x = jax.random.normal(k1, (N, C, H, W), jnp.float32)

    # deterministic (non-trivial) running buffers
    state = TNormState(
        running_mean=0.1 * jnp.arange(D * C, dtype=jnp.float32).reshape(D, C),
        running_var=1.0 + 0.05 * jnp.arange(D * C, dtype=jnp.float32).reshape(D, C),
        num_batches_tracked=jnp.zeros((D,), jnp.int32),
    )
    selected_domain = jnp.array([1, 2], dtype=jnp.int32)   # per-sample target domain

    # --- Test A: training + convert, int domain_index (batch stats + EMA update),
    #             tiny tile budget to force a multi-tile (128-lane) reduction path. ---
    out, new_state = tnorm_forward(
        x, state,
        training=True, convert=True,
        domain_index=0, selected_domain=selected_domain,
        eps=eps, momentum=momentum, using_moving_average=True,
        tile_target_bytes=4096,
    )
    jax.block_until_ready(out)
    jax.block_until_ready(new_state.running_mean)

    ref_out, ref_mean_bn, ref_var_bn = _ref_train_convert(x, state, selected_domain, eps)
    ref_rm = momentum * state.running_mean[0] + (1 - momentum) * ref_mean_bn.reshape(-1)
    ref_rv = momentum * state.running_var[0] + (1 - momentum) * ref_var_bn.reshape(-1)
    assert jnp.allclose(out, ref_out, rtol=2e-4, atol=2e-4), "train/convert output mismatch"
    assert jnp.allclose(new_state.running_mean[0], ref_rm, rtol=2e-4, atol=2e-4), "running_mean mismatch"
    assert jnp.allclose(new_state.running_var[0], ref_rv, rtol=2e-4, atol=2e-4), "running_var mismatch"

    # --- Test B: spatial size not a multiple of 128 (masked partial lane tile)
    #             with a mean offset to exercise the centered-accumulation path. ---
    H2, W2 = 16, 17
    x2 = 10.0 + jax.random.normal(k2, (N, C, H2, W2), jnp.float32)
    out2, _ = tnorm_forward(
        x2, state,
        training=True, convert=True,
        domain_index=0, selected_domain=selected_domain,
        eps=eps, momentum=momentum, using_moving_average=True,
        tile_target_bytes=4096,
    )
    jax.block_until_ready(out2)
    ref_out2, _, _ = _ref_train_convert(x2, state, selected_domain, eps)
    assert jnp.allclose(out2, ref_out2, rtol=1e-3, atol=1e-3), "masked-tile output mismatch"

    # --- Test C: eval + convert (running-stat source -> target domain);
    #             default (big) tile budget, no instance-stats pass on this path. ---
    src_idx = jnp.array([0, 1], dtype=jnp.int32)
    eval_out, _ = tnorm_forward(
        x, state,
        training=False, convert=True,
        domain_index=(src_idx, 2),
        eps=eps,
    )
    jax.block_until_ready(eval_out)
    ref_eval = _ref_eval_convert(x, state, src_idx, 2, eps)
    assert jnp.allclose(eval_out, ref_eval, rtol=2e-4, atol=2e-4), "eval/convert output mismatch"

    # --- Test D: N*C < 8 rows (full-dim row block) and full-L lane block. ---
    C3, H3, W3 = 3, 8, 8
    x3 = jax.random.normal(k3, (1, C3, H3, W3), jnp.float32)
    state3 = TNormState(
        running_mean=0.1 * jnp.arange(D * C3, dtype=jnp.float32).reshape(D, C3),
        running_var=1.0 + 0.05 * jnp.arange(D * C3, dtype=jnp.float32).reshape(D, C3),
        num_batches_tracked=jnp.zeros((D,), jnp.int32),
    )
    sel3 = jnp.array([2], dtype=jnp.int32)
    out3, _ = tnorm_forward(
        x3, state3,
        training=True, convert=True,
        domain_index=1, selected_domain=sel3,
        eps=eps, momentum=momentum, using_moving_average=True,
    )
    jax.block_until_ready(out3)
    ref_out3, _, _ = _ref_train_convert(x3, state3, sel3, eps)
    assert jnp.allclose(out3, ref_out3, rtol=2e-4, atol=2e-4), "small-row-count output mismatch"

    print("KERNEL_OK")
</pallas_src>

<mosaic_0001>
module attributes {stable_mosaic.version = 11 : i64} {
  func.func @_stats_kernel(%arg0: i32, %arg1: i32, %arg2: memref<8x128xf32, #tpu.memory_space<vmem>>, %arg3: memref<8x1xf32, #tpu.memory_space<vmem>>, %arg4: memref<8x1xf32, #tpu.memory_space<vmem>>, %arg5: memref<8x1xf32, #tpu.memory_space<vmem>>, %arg6: memref<8x1xf32, #tpu.memory_space<vmem>>, %arg7: memref<8x1xf32, #tpu.memory_space<vmem>>) attributes {dimension_semantics = [#tpu.dimension_semantics<parallel>, #tpu.dimension_semantics<arbitrary>], iteration_bounds = array<i64: 1, 2>, scalar_prefetch = 0 : i64, scratch_operands = 3 : i64, tpu.core_type = #tpu.core_type<tc>, window_params = [{transform_indices = @transform_0, window_bounds = array<i64: 8, 128>}, {transform_indices = @transform_1, window_bounds = array<i64: 8, 1>}, {transform_indices = @transform_2, window_bounds = array<i64: 8, 1>}]} {
    %c0 = arith.constant 0 : index
    %c0_0 = arith.constant 0 : index
    %0 = vector.load %arg2[%c0, %c0_0] : memref<8x128xf32, #tpu.memory_space<vmem>>, vector<8x128xf32>
    %c0_i32 = arith.constant 0 : i32
    %1 = arith.cmpi eq, %arg1, %c0_i32 : i32
    %2 = arith.extui %1 : i1 to i32
    %c0_i32_1 = arith.constant 0 : i32
    %3 = arith.cmpi ne, %2, %c0_i32_1 : i32
    scf.if %3 {
      %cst_14 = arith.constant dense<0.000000e+00> : vector<8xf32>
      %21 = vector.multi_reduction <add>, %0, %cst_14 [1] : vector<8x128xf32> to vector<8xf32>
      %22 = vector.shape_cast %21 : vector<8xf32> to vector<8x1xf32>
      %cst_15 = arith.constant 7.812500e-03 : f32
      %23 = vector.broadcast %cst_15 : f32 to vector<8x1xf32>
      %24 = arith.mulf %22, %23 : vector<8x1xf32>
      %c0_16 = arith.constant 0 : index
      %c0_17 = arith.constant 0 : index
      %25 = vector.load %arg5[%c0_16, %c0_17] : memref<8x1xf32, #tpu.memory_space<vmem>>, vector<8x1xf32>
      tpu.vector_store %arg5[%c0_16, %c0_17], %24 {strides = array<i32>} : memref<8x1xf32, #tpu.memory_space<vmem>>, vector<8x1xf32>,
      %cst_18 = arith.constant 0.000000e+00 : f32
      %26 = vector.broadcast %cst_18 : f32 to vector<8x1xf32>
      %c0_19 = arith.constant 0 : index
      %c0_20 = arith.constant 0 : index
      %27 = vector.load %arg6[%c0_19, %c0_20] : memref<8x1xf32, #tpu.memory_space<vmem>>, vector<8x1xf32>
      tpu.vector_store %arg6[%c0_19, %c0_20], %26 {strides = array<i32>} : memref<8x1xf32, #tpu.memory_space<vmem>>, vector<8x1xf32>,
      %cst_21 = arith.constant 0.000000e+00 : f32
      %28 = vector.broadcast %cst_21 : f32 to vector<8x1xf32>
      %c0_22 = arith.constant 0 : index
      %c0_23 = arith.constant 0 : index
      %29 = vector.load %arg7[%c0_22, %c0_23] : memref<8x1xf32, #tpu.memory_space<vmem>>, vector<8x1xf32>
      tpu.vector_store %arg7[%c0_22, %c0_23], %28 {strides = array<i32>} : memref<8x1xf32, #tpu.memory_space<vmem>>, vector<8x1xf32>,
    } else {
    }
    %c0_2 = arith.constant 0 : index
    %c0_3 = arith.constant 0 : index
    %4 = vector.load %arg5[%c0_2, %c0_3] : memref<8x1xf32, #tpu.memory_space<vmem>>, vector<8x1xf32>
    %5 = vector.broadcast %4 : vector<8x1xf32> to vector<8x128xf32>
    %6 = arith.subf %0, %5 : vector<8x128xf32>
    %c0_4 = arith.constant 0 : index
    %c0_5 = arith.constant 0 : index
    %7 = vector.load %arg6[%c0_4, %c0_5] : memref<8x1xf32, #tpu.memory_space<vmem>>, vector<8x1xf32>
    %cst = arith.constant dense<0.000000e+00> : vector<8xf32>
    %8 = vector.multi_reduction <add>, %6, %cst [1] : vector<8x128xf32> to vector<8xf32>
    %9 = vector.shape_cast %8 : vector<8xf32> to vector<8x1xf32>
    %10 = arith.addf %7, %9 : vector<8x1xf32>
    %c0_6 = arith.constant 0 : index
    %c0_7 = arith.constant 0 : index
    %11 = vector.load %arg6[%c0_6, %c0_7] : memref<8x1xf32, #tpu.memory_space<vmem>>, vector<8x1xf32>
    tpu.vector_store %arg6[%c0_6, %c0_7], %10 {strides = array<i32>} : memref<8x1xf32, #tpu.memory_space<vmem>>, vector<8x1xf32>,
    %c0_8 = arith.constant 0 : index
    %c0_9 = arith.constant 0 : index
    %12 = vector.load %arg7[%c0_8, %c0_9] : memref<8x1xf32, #tpu.memory_space<vmem>>, vector<8x1xf32>
    %13 = arith.mulf %6, %6 : vector<8x128xf32>
    %cst_10 = arith.constant dense<0.000000e+00> : vector<8xf32>
    %14 = vector.multi_reduction <add>, %13, %cst_10 [1] : vector<8x128xf32> to vector<8xf32>
    %15 = vector.shape_cast %14 : vector<8xf32> to vector<8x1xf32>
    %16 = arith.addf %12, %15 : vector<8x1xf32>
    %c0_11 = arith.constant 0 : index
    %c0_12 = arith.constant 0 : index
    %17 = vector.load %arg7[%c0_11, %c0_12] : memref<8x1xf32, #tpu.memory_space<vmem>>, vector<8x1xf32>
    tpu.vector_store %arg7[%c0_11, %c0_12], %16 {strides = array<i32>} : memref<8x1xf32, #tpu.memory_space<vmem>>, vector<8x1xf32>,
    %c1_i32 = arith.constant 1 : i32
    %18 = arith.cmpi eq, %arg1, %c1_i32 : i32
    %19 = arith.extui %18 : i1 to i32
    %c0_i32_13 = arith.constant 0 : i32
    %20 = arith.cmpi ne, %19, %c0_i32_13 : i32
    scf.if %20 {
      %c0_14 = arith.constant 0 : index
      %c0_15 = arith.constant 0 : index
      %21 = vector.load %arg6[%c0_14, %c0_15] : memref<8x1xf32, #tpu.memory_space<vmem>>, vector<8x1xf32>
      %c0_16 = arith.constant 0 : index
      %c0_17 = arith.constant 0 : index
      %22 = vector.load %arg7[%c0_16, %c0_17] : memref<8x1xf32, #tpu.memory_space<vmem>>, vector<8x1xf32>
      %c0_18 = arith.constant 0 : index
      %c0_19 = arith.constant 0 : index
      %23 = vector.load %arg5[%c0_18, %c0_19] : memref<8x1xf32, #tpu.memory_space<vmem>>, vector<8x1xf32>
      %cst_20 = arith.constant 3.906250e-03 : f32
      %24 = vector.broadcast %cst_20 : f32 to vector<8x1xf32>
      %25 = arith.mulf %21, %24 : vector<8x1xf32>
      %26 = arith.addf %23, %25 : vector<8x1xf32>
      %c0_21 = arith.constant 0 : index
      %c0_22 = arith.constant 0 : index
      %27 = vector.load %arg3[%c0_21, %c0_22] : memref<8x1xf32, #tpu.memory_space<vmem>>, vector<8x1xf32>
      tpu.vector_store %arg3[%c0_21, %c0_22], %26 {strides = array<i32>} : memref<8x1xf32, #tpu.memory_space<vmem>>, vector<8x1xf32>,
      %28 = arith.mulf %21, %21 : vector<8x1xf32>
      %cst_23 = arith.constant 3.906250e-03 : f32
      %29 = vector.broadcast %cst_23 : f32 to vector<8x1xf32>
      %30 = arith.mulf %28, %29 : vector<8x1xf32>
      %31 = arith.subf %22, %30 : vector<8x1xf32>
      %cst_24 = arith.constant 0.00392156886 : f32
      %32 = vector.broadcast %cst_24 : f32 to vector<8x1xf32>
      %33 = arith.mulf %31, %32 : vector<8x1xf32>
      %c0_25 = arith.constant 0 : index
      %c0_26 = arith.constant 0 : index
      %34 = vector.load %arg4[%c0_25, %c0_26] : memref<8x1xf32, #tpu.memory_space<vmem>>, vector<8x1xf32>
      tpu.vector_store %arg4[%c0_25, %c0_26], %33 {strides = array<i32>} : memref<8x1xf32, #tpu.memory_space<vmem>>, vector<8x1xf32>,
    } else {
    }
    return
  }
  func.func @transform_0(%arg0: i32, %arg1: i32) -> (i32, i32) {
    %c0_i32 = arith.constant 0 : i32
    return %arg0, %arg1 : i32, i32
  }
  func.func @transform_1(%arg0: i32, %arg1: i32) -> (i32, i32) {
    %c0_i32 = arith.constant 0 : i32
    %c0_i32_0 = arith.constant 0 : i32
    return %arg0, %c0_i32 : i32, i32
  }
  func.func @transform_2(%arg0: i32, %arg1: i32) -> (i32, i32) {
    %c0_i32 = arith.constant 0 : i32
    %c0_i32_0 = arith.constant 0 : i32
    return %arg0, %c0_i32 : i32, i32
  }
}

</mosaic_0001>

<llo_original>
// kernel: tpu_custom_call.1
$region0: #{tpu_custom_call.1}
  #allocation0 [shape = 'u32[]', space=smem, size = 0x4, offset = 0x4, fixed_abs, tag = 'smem constant byte address 0x4 - core index']
  #allocation1 [shape = 'u32[144,128]{1,0:T(1,128)}', space=vmem, size = 0x12000, scoped, tag = 'internal scratch']
  #allocation2 [shape = 'f32[8,1]{1,0:T(8,128)}', space=vmem, size = 0x1000, scoped, tag = 'scratch operand']
  #allocation3 [shape = 'f32[8,1]{1,0:T(8,128)}', space=vmem, size = 0x1000, scoped, tag = 'scratch operand']
  #allocation4 [shape = 'f32[8,1]{1,0:T(8,128)}', space=vmem, size = 0x1000, scoped, tag = 'scratch operand']
  %s0 = inlined_call_operand.hbm [shape: f32[8,256], index: 0, kind: input, shape index: {}]
  %s1 = inlined_call_operand.vmem [shape: f32[8,1], index: 1, kind: output, shape index: {0}]
  %s2 = inlined_call_operand.vmem [shape: f32[8,1], index: 2, kind: output, shape index: {1}]
  %3 = xla_tuple %s1, %s2
  %s4 = sld [smem:[#allocation0]]
  $region57: #{tpu_custom_call.1} parent=0
    _
  %s6 = ssub.s32 1, %s4
  %s7 = scalar_select 0, %s6, %s4
  $region1: #{tpu_custom_call.1} parent=0
    #allocation5 [shape = 'u8[8192]{0}', space=vmem, size = 0x2000, scoped, tag = 'input window, operand 0']
    #allocation6 [shape = 's32[2]{0}', space=sflag, size = 0x8, scoped, tag = 'scoped memory for tpu_custom_call.1']
    %8 = vsyncpa [#allocation6], 0
    %s9 = scalar_lea.sflag [#allocation6], 1
    %10 = vsyncpa %s9, 0
    loop: start=0, step=1, limit=4
    $region2: #{tpu_custom_call.1} parent=1 // loop_pre_header
      _
    $region3: #{tpu_custom_call.1} parent=1 // loop_header
      %s12 = sphi 0, %s16
      %p13 = scmp.ge.s32.totalorder %s12, 4
      %s19 = sphi 0, %s31
      %s20 = sphi 0, %s27
      %s21 = sphi 0, %s19
      %s22 = sphi 0, %s20
      %s23 = sphi 0, %s21
      %s24 = sphi 0, %s22
      %s36 = sphi 0, %s38
      %s39 = sphi 0, %s36
      %s40 = sphi 0, %s39
      %s56 = sphi 0, %s40
      %s62 = sphi 0, %s64
      %s65 = sphi 0, %s62
      %s66 = sphi 0, %s65
      %s82 = sphi 0, %s66
      %s88 = sphi 0, %s90
      %s91 = sphi 0, %s88
      %s92 = sphi 0, %s91
      %s108 = sphi 0, %s92
    $region4: #{tpu_custom_call.1} parent=1 // loop_header_branch
      %15 = sbr.rel (%p13) target = $region8
    $region5: #{tpu_custom_call.1} parent=1 // loop_body
      %s17 = ssub.s32 %s12, 1
      %s18 = ssub.s32 %s12, 2
      %s25 = sadd.s32 1, %s20
      %p26 = scmp.ge.s32.totalorder %s25, 2
      %s27 = scalar_select %p26, 0, %s25
      %s28 = sadd.s32 1, %s19
      %s29 = scalar_select %p26, %s28, %s19
      %p30 = scmp.ge.s32.totalorder %s29, 1
      %s31 = scalar_select %p30, 0, %s29
      %s32 = ssub.s32 %s19, %s31
      %s33 = ssub.s32 %s20, %s27
      %s34 = sor.u32 %s32, %s33
      %p35 = scmp.eq.s32.totalorder %s34, 0
      %s37 = sadd.s32 %s36, 1
      %s38 = scalar_select %p35, %s36, %s37
      %p41 = pneg %p35
      %p42 = scmp.eq.s32.totalorder %s12, 1
      %p43 = por %p41, %p42
      %p44 = scmp.ne.s32.totalorder %s36, %s39
      %p45 = scmp.eq.s32.totalorder %s12, 0
      %p46 = por %p44, %p45
      %p47 = scmp.ne.s32.totalorder %s36, %s39
      %p48 = scmp.eq.s32.totalorder %s17, 1
      %p49 = por %p47, %p48
      %p50 = scmp.ne.s32.totalorder %s39, %s40
      %p51 = scmp.eq.s32.totalorder %s17, 0
      %p52 = por %p50, %p51
      %p53 = scmp.ne.s32.totalorder %s39, %s40
      %p54 = scmp.eq.s32.totalorder %s18, 1
      %p55 = por %p53, %p54
      %p57 = scmp.ne.s32.totalorder %s40, %s56
      %p58 = scmp.eq.s32.totalorder %s18, 0
      %p59 = por %p57, %p58
      %s60 = ssub.s32 %s19, %s31
      %p61 = scmp.eq.s32.totalorder %s60, 0
      %s63 = sadd.s32 %s62, 1
      %s64 = scalar_select %p61, %s62, %s63
      %p67 = pneg %p61
      %p68 = scmp.eq.s32.totalorder %s12, 1
      %p69 = por %p67, %p68
      %p70 = scmp.ne.s32.totalorder %s62, %s65
      %p71 = scmp.eq.s32.totalorder %s12, 0
      %p72 = por %p70, %p71
      %p73 = scmp.ne.s32.totalorder %s62, %s65
      %p74 = scmp.eq.s32.totalorder %s17, 1
      %p75 = por %p73, %p74
      %p76 = scmp.ne.s32.totalorder %s65, %s66
      %p77 = scmp.eq.s32.totalorder %s17, 0
      %p78 = por %p76, %p77
      %p79 = scmp.ne.s32.totalorder %s65, %s66
      %p80 = scmp.eq.s32.totalorder %s18, 1
      %p81 = por %p79, %p80
      %p83 = scmp.ne.s32.totalorder %s66, %s82
      %p84 = scmp.eq.s32.totalorder %s18, 0
      %p85 = por %p83, %p84
      %s86 = ssub.s32 %s19, %s31
      %p87 = scmp.eq.s32.totalorder %s86, 0
      %s89 = sadd.s32 %s88, 1
      %s90 = scalar_select %p87, %s88, %s89
      %p93 = pneg %p87
      %p94 = scmp.eq.s32.totalorder %s12, 1
      %p95 = por %p93, %p94
      %p96 = scmp.ne.s32.totalorder %s88, %s91
      %p97 = scmp.eq.s32.totalorder %s12, 0
      %p98 = por %p96, %p97
      %p99 = scmp.ne.s32.totalorder %s88, %s91
      %p100 = scmp.eq.s32.totalorder %s17, 1
      %p101 = por %p99, %p100
      %p102 = scmp.ne.s32.totalorder %s91, %s92
      %p103 = scmp.eq.s32.totalorder %s17, 0
      %p104 = por %p102, %p103
      %p105 = scmp.ne.s32.totalorder %s91, %s92
      %p106 = scmp.eq.s32.totalorder %s18, 1
      %p107 = por %p105, %p106
      %p109 = scmp.ne.s32.totalorder %s92, %s108
      %p110 = scmp.eq.s32.totalorder %s18, 0
      %p111 = por %p109, %p110
      %p112 = scmp.le.s32.totalorder 1, %s12
      %p113 = scmp.lt.s32.totalorder %s12, 3
      %p114 = pnand %p112, %p113
      %p115 = pneg %p114
      // Predicated region
      $region9: #{tpu_custom_call.1} parent=5 // pred_check
        _
      $region10: #{tpu_custom_call.1} parent=5 // pred_check_branch
        %117 = sbr.rel (%p114) target = $region12
      $region11: #{tpu_custom_call.1} parent=5 // pred_region
        %s118 = ssub.s32 %s12, 1
      $region12: #{tpu_custom_call.1} parent=5 // pred_fallthru
        _
      %p119 = scmp.lt.s32.totalorder %s12, 2
      // Predicated region
      $region13: #{tpu_custom_call.1} parent=5 // pred_check
        %p120 = pneg %p119
      $region14: #{tpu_custom_call.1} parent=5 // pred_check_branch
        %122 = sbr.rel (%p120) target = $region16
      $region15: #{tpu_custom_call.1} parent=5 // pred_region
        // Predicated region
        $region17: #{tpu_custom_call.1} parent=15 // pred_check
          %p123 = pneg %p46
        $region18: #{tpu_custom_call.1} parent=15 // pred_check_branch
          %125 = sbr.rel (%p123) target = $region20
        $region19: #{tpu_custom_call.1} parent=15 // pred_region
          %s126 = sand.u32 %s36, 1
          %s127 = scalar_lea.sflag [#allocation6], %s126
          %s128 = sand.u32 %s36, 1
          %s129 = smul.addr %s128, 8
          %s130 = scalar_lea.vmem [#allocation5], %s129
          %s132 = ssub.s32 128, 128
          %133 = vsyncadd %s127, %s132
          %s134 = smul.addr %s19, 2
          %s135 = sadd.s32 %s20, %s134
          %s136 = smul.addr %s135, 128
          %s137 = scalar_lea.hbm %s0, %s136
          %s139 = sshll.u32 %s130, 4
          %s140 = int_to_ptr.vmem [resolvable:$true] %s139
          %142 = dma.hbm_to_vmem [thread:$0]  %s137, 128, %s140, %s127
        $region20: #{tpu_custom_call.1} parent=15 // pred_fallthru
          _
      $region16: #{tpu_custom_call.1} parent=5 // pred_fallthru
        _
      %p143 = scmp.le.s32.totalorder 1, %s12
      %p144 = scmp.lt.s32.totalorder %s12, 3
      %p145 = pnand %p143, %p144
      %p146 = pneg %p145
      // Predicated region
      $region21: #{tpu_custom_call.1} parent=5 // pred_check
        _
      $region22: #{tpu_custom_call.1} parent=5 // pred_check_branch
        %148 = sbr.rel (%p145) target = $region24
      $region23: #{tpu_custom_call.1} parent=5 // pred_region
        %s149 = ssub.s32 %s12, 1
        %s150 = sand.u32 %s39, 1
        %s151 = scalar_lea.sflag [#allocation6], %s150
        %s152 = sand.u32 %s39, 1
        %s153 = smul.addr %s152, 8
        %s154 = scalar_lea.vmem [#allocation5], %s153
        // Predicated region
        $region25: #{tpu_custom_call.1} parent=23 // pred_check
          %p155 = pneg %p52
        $region26: #{tpu_custom_call.1} parent=23 // pred_check_branch
          %157 = sbr.rel (%p155) target = $region28
        $region27: #{tpu_custom_call.1} parent=23 // pred_region
          %158 = dma.done %s151, 128
        $region28: #{tpu_custom_call.1} parent=23 // pred_fallthru
          _
        %s159 = sand.u32 %s39, 1
        %s160 = scalar_lea.sflag [#allocation6], %s159
        %s161 = sand.u32 %s39, 1
        %s162 = smul.addr %s161, 8
        %s163 = scalar_lea.vmem [#allocation5], %s162
        %p164 = pneg %p52
        %p165 = pneg %p49
        %p166 = pneg %p78
        %p167 = pneg %p75
        %p168 = scmp.lt.s32.totalorder %s21, 0
        %s169 = scalar_select %p168, %s21, 0
        %s170 = smul.addr %s169, 8
        %s171 = scalar_lea.vmem %s1, %s170
        %p172 = pneg %p104
        %p173 = pneg %p101
        %p174 = scmp.lt.s32.totalorder %s21, 0
        %s175 = scalar_select %p174, %s21, 0
        %s176 = smul.addr %s175, 8
        %s177 = scalar_lea.vmem %s2, %s176
        %p178 = scmp.lt.s32.totalorder %s21, 0
        %s179 = scalar_select %p178, %s21, 0
        %s180 = smul.addr %s179, 8
        %s181 = scalar_lea.vmem %s1, %s180
        %p182 = scmp.lt.s32.totalorder %s21, 0
        %s183 = scalar_select %p182, %s21, 0
        %s184 = smul.addr %s183, 8
        %s185 = scalar_lea.vmem %s2, %s184
        %v186 = vld [vmem:[%s154] sm:$0xff]
        %p187 = scmp.eq.s32.totalorder %s22, 0
        // Predicated region
        $region29: #{tpu_custom_call.1} parent=23 // pred_check
          %p188 = pneg %p187
        $region30: #{tpu_custom_call.1} parent=23 // pred_check_branch
          %190 = sbr.rel (%p188) target = $region32
        $region31: #{tpu_custom_call.1} parent=23 // pred_region
          %191 = vadd.xlane.f32.xlu0 %v186
          %v192 = vpop.xlane.xlu0 %191
          %v193 = vmul.f32 %v192, 0.0078125
          %vm194 = vcmask 7168
          %195 = vst.msk [vmem:[#allocation2] sm:$0xff] %vm194, %v193
          %196 = vst.msk [vmem:[#allocation3] sm:$0xff] %vm194, 0.0
          %197 = vst.msk [vmem:[#allocation4] sm:$0xff] %vm194, 0.0
        $region32: #{tpu_custom_call.1} parent=23 // pred_fallthru
          _
        %v198 = vld [vmem:[#allocation2] sm:$0xff]
        %200 = vset.pattern.permute.xlu0 0
        %201 = vperm.xlu0 %200, %v198
        %v202 = vpop.permute.xlu0 %201
        %v204 = vsub.f32 %v186, %v202
        %v205 = vld [vmem:[#allocation3] sm:$0xff]
        %206 = vadd.xlane.f32.xlu0 %v204
        %v207 = vpop.xlane.xlu0 %206
        %v208 = vadd.f32 %v205, %v207
        %vm209 = vcmask 7168
        %210 = vst.msk [vmem:[#allocation3] sm:$0xff] %vm209, %v208
        %v211 = vld [vmem:[#allocation4] sm:$0xff]
        %v212 = vmul.f32 %v204, %v204
        %213 = vadd.xlane.f32.xlu0 %v212
        %v214 = vpop.xlane.xlu0 %213
        %v215 = vadd.f32 %v211, %v214
        %216 = vst.msk [vmem:[#allocation4] sm:$0xff] %vm209, %v215
        %p217 = scmp.eq.s32.totalorder %s22, 1
        // Predicated region
        $region33: #{tpu_custom_call.1} parent=23 // pred_check
          %p218 = pneg %p217
        $region34: #{tpu_custom_call.1} parent=23 // pred_check_branch
          %220 = sbr.rel (%p218) target = $region36
        $region35: #{tpu_custom_call.1} parent=23 // pred_region
          %v221 = vld [vmem:[#allocation3] sm:$0xff]
          %v222 = vld [vmem:[#allocation4] sm:$0xff]
          %v223 = vld [vmem:[#allocation2] sm:$0xff]
          %v224 = vmul.f32 %v221, 0.00390625
          %v225 = vadd.f32 %v223, %v224
          %226 = vst.msk [vmem:[%s181] sm:$0xff] %vm209, %v225
          %v227 = vmul.f32 %v221, %v221
          %v228 = vmul.f32 %v227, 0.00390625
          %v229 = vsub.f32 %v222, %v228
          %v230 = vmul.f32 %v229, 0.003921569
          %231 = vst.msk [vmem:[%s185] sm:$0xff] %vm209, %v230
        $region36: #{tpu_custom_call.1} parent=23 // pred_fallthru
          _
        %p232 = scmp.lt.s32.totalorder %s21, 0
        %s233 = scalar_select %p232, %s21, 0
        %s234 = smul.addr %s233, 8
        %s235 = scalar_lea.vmem %s1, %s234
        %p236 = scmp.lt.s32.totalorder %s21, 0
        %s237 = scalar_select %p236, %s21, 0
        %s238 = smul.addr %s237, 8
        %s239 = scalar_lea.vmem %s2, %s238
        // Predicated region
        $region37: #{tpu_custom_call.1} parent=23 // pred_check
          %p240 = pneg %p75
        $region38: #{tpu_custom_call.1} parent=23 // pred_check_branch
          %242 = sbr.rel (%p240) target = $region40
        $region39: #{tpu_custom_call.1} parent=23 // pred_region
          _
        $region40: #{tpu_custom_call.1} parent=23 // pred_fallthru
          _
        // Predicated region
        $region41: #{tpu_custom_call.1} parent=23 // pred_check
          %p243 = pneg %p101
        $region42: #{tpu_custom_call.1} parent=23 // pred_check_branch
          %245 = sbr.rel (%p243) target = $region44
        $region43: #{tpu_custom_call.1} parent=23 // pred_region
          _
        $region44: #{tpu_custom_call.1} parent=23 // pred_fallthru
          _
        // Predicated region
        $region45: #{tpu_custom_call.1} parent=23 // pred_check
          %p246 = pneg %p75
        $region46: #{tpu_custom_call.1} parent=23 // pred_check_branch
          %248 = sbr.rel (%p246) target = $region48
        $region47: #{tpu_custom_call.1} parent=23 // pred_region
          %p249 = scmp.lt.s32.totalorder %s21, 0
          %s250 = scalar_select %p249, %s21, 0
          %s251 = smul.addr %s250, 8
          %s252 = scalar_lea.vmem %s1, %s251
        $region48: #{tpu_custom_call.1} parent=23 // pred_fallthru
          _
        // Predicated region
        $region49: #{tpu_custom_call.1} parent=23 // pred_check
          %p253 = pneg %p101
        $region50: #{tpu_custom_call.1} parent=23 // pred_check_branch
          %255 = sbr.rel (%p253) target = $region52
        $region51: #{tpu_custom_call.1} parent=23 // pred_region
          %p256 = scmp.lt.s32.totalorder %s21, 0
          %s257 = scalar_select %p256, %s21, 0
          %s258 = smul.addr %s257, 8
          %s259 = scalar_lea.vmem %s2, %s258
        $region52: #{tpu_custom_call.1} parent=23 // pred_fallthru
          _
      $region24: #{tpu_custom_call.1} parent=5 // pred_fallthru
        _
      %p260 = scmp.le.s32.totalorder 2, %s12
      // Predicated region
      $region53: #{tpu_custom_call.1} parent=5 // pred_check
        %p261 = pneg %p260
      $region54: #{tpu_custom_call.1} parent=5 // pred_check_branch
        %263 = sbr.rel (%p261) target = $region56
      $region55: #{tpu_custom_call.1} parent=5 // pred_region
        %s264 = ssub.s32 %s12, 2
      $region56: #{tpu_custom_call.1} parent=5 // pred_fallthru
        _
    $region6: #{tpu_custom_call.1} parent=1 // loop_footer
      %s16 = sadd.s32 1, %s12
    $region7: #{tpu_custom_call.1} parent=1 // loop_footer_branch
      %11 = sbr.rel target = $region3
    $region8: #{tpu_custom_call.1} parent=1 // loop_exit
      _
    %265 = vsyncpa [#allocation6], 1
    %s266 = scalar_lea.sflag [#allocation6], 1
    %267 = vsyncpa %s266, 1

</llo_original>
